<compile_context>
chip_gen: v7x
topology: tpu7x:2x2x1
jax: 0.10.0
libtpu: 0.0.40
codegen_flags: <defaults>
</compile_context>

<pallas_src>
import functools

import jax
import jax.numpy as jnp
from jax import lax
from jax.experimental import pallas as pl
from jax.experimental.pallas import tpu as pltpu

LANE_PAD = 128  # lane-dense width for hidden / class dims


# ----------------------------------------------------------------------------
# Fused Pallas kernel:
#   build adj1/adj2 from top-k indices -> layer1 -> ReLU -> layer2 -> bias
#   -> masked log_softmax, all in VMEM.
# ----------------------------------------------------------------------------
def _gcn_fused_kernel(adj_ref, idx1_ref, idx2_ref, x_ref, w1_ref, b1_ref,
                      w2_ref, b2_ref, out_ref, *, nclass, k1, k2):
    adj = adj_ref[...].astype(jnp.float32)                 # [N, N]
    col = lax.broadcasted_iota(jnp.int32, adj.shape, 1)

    def sampled_adj(idx, k):
        # keep[i, idx[i, j]] = True.  Indices pointing at zero adjacency
        # entries (rows with < k neighbors) are harmless: the kept value is 0.
        keep = col == idx[:, 0:1]
        for j in range(1, k):
            keep = jnp.logical_or(keep, col == idx[:, j:j + 1])
        sampled = jnp.where(keep, adj, 0.0)
        row_sum = jnp.sum(sampled, axis=1, keepdims=True)
        inv = pl.reciprocal(jnp.maximum(row_sum, 1e-12), approx=False)
        return (sampled * inv).astype(jnp.bfloat16)        # MXU operand

    # ---- layer 1: H = relu(adj1 @ (x @ W1) + b1)   (lane dims padded to 128)
    adj1 = sampled_adj(idx1_ref[...], k1)
    s1 = jnp.dot(x_ref[...], w1_ref[...], preferred_element_type=jnp.float32)
    h = jnp.dot(adj1, s1.astype(jnp.bfloat16),
                preferred_element_type=jnp.float32)
    h = jnp.maximum(h + b1_ref[...], 0.0)                  # f32 epilogue
    # dropout(training=False) -> identity

    # ---- layer 2: Z = adj2 @ (H @ W2) + b2
    adj2 = sampled_adj(idx2_ref[...], k2)
    s2 = jnp.dot(h.astype(jnp.bfloat16), w2_ref[...],
                 preferred_element_type=jnp.float32)
    z = jnp.dot(adj2, s2.astype(jnp.bfloat16),
                preferred_element_type=jnp.float32)
    z = z + b2_ref[...]

    # ---- log_softmax over the valid class lanes only (padding masked out)
    cls = lax.broadcasted_iota(jnp.int32, z.shape, 1)
    valid = cls < nclass
    zm = jnp.where(valid, z, -jnp.inf)
    m = jnp.max(zm, axis=1, keepdims=True)
    s = zm - m
    lse = jnp.log(jnp.sum(jnp.exp(s), axis=1, keepdims=True))
    out_ref[...] = jnp.where(valid, s - lse, 0.0).astype(out_ref.dtype)


# ----------------------------------------------------------------------------
# One-time parameter prep (hoisted out of the per-call forward, per review):
# pad lane dims to 128 and cast MXU operands to bf16.
# ----------------------------------------------------------------------------
def prepare_gcn_params(params):
    (w1, b1), (w2, b2) = params
    f_in, nhid = w1.shape
    nclass = w2.shape[1]
    pad = LANE_PAD
    w1p = jnp.zeros((f_in, pad), jnp.bfloat16).at[:, :nhid].set(
        w1.astype(jnp.bfloat16))
    b1p = jnp.zeros((1, pad), jnp.float32).at[:, :nhid].set(
        b1.reshape(1, -1).astype(jnp.float32))
    w2p = jnp.zeros((pad, pad), jnp.bfloat16).at[:nhid, :nclass].set(
        w2.astype(jnp.bfloat16))
    b2p = jnp.zeros((1, pad), jnp.float32).at[:, :nclass].set(
        b2.reshape(1, -1).astype(jnp.float32))
    return w1p, b1p, w2p, b2p


# ----------------------------------------------------------------------------
# Wrapper: single pallas_call; only x/adj are cast per call (jit-fused).
# ----------------------------------------------------------------------------
def gcn_forward_fused(x, adj, idx1, idx2, w1p, b1p, w2p, b2p, *, nclass):
    n, f_in = x.shape
    pad = LANE_PAD
    k1, k2 = idx1.shape[1], idx2.shape[1]

    x_b = x.astype(jnp.bfloat16)
    adj_b = adj.astype(jnp.bfloat16)

    # VMEM budget: inputs + output + in-kernel f32 temps (adj copy, sampled,
    # masks), with headroom; clamp so it is valid on every generation
    # (>=16 MiB default-safe floor, <=64 MiB = v7x per-TC capacity).
    in_bytes = (n * n * 2 + x_b.size * 2
                + w1p.size * 2 + w2p.size * 2
                + (b1p.size + b2p.size) * 4
                + (idx1.size + idx2.size) * 4)
    out_bytes = n * pad * 4
    scratch_bytes = 4 * n * n * 4
    vmem_limit = int(min(max(in_bytes + out_bytes + scratch_bytes + (2 << 20),
                             16 << 20), 64 << 20))

    flops = (2 * n * f_in * pad + 2 * n * n * pad       # layer 1
             + 2 * n * pad * pad + 2 * n * n * pad)     # layer 2
    bytes_accessed = in_bytes + out_bytes

    kernel = functools.partial(_gcn_fused_kernel, nclass=nclass, k1=k1, k2=k2)
    out_pad = pl.pallas_call(
        kernel,
        out_shape=jax.ShapeDtypeStruct((n, pad), jnp.float32),
        in_specs=[
            pl.BlockSpec(memory_space=pltpu.VMEM),  # adj  [N, N]   bf16
            pl.BlockSpec(memory_space=pltpu.VMEM),  # idx1 [N, k1]  int32
            pl.BlockSpec(memory_space=pltpu.VMEM),  # idx2 [N, k2]  int32
            pl.BlockSpec(memory_space=pltpu.VMEM),  # x    [N, F]   bf16
            pl.BlockSpec(memory_space=pltpu.VMEM),  # W1   [F, 128] bf16
            pl.BlockSpec(memory_space=pltpu.VMEM),  # b1   [1, 128] f32
            pl.BlockSpec(memory_space=pltpu.VMEM),  # W2   [128,128] bf16
            pl.BlockSpec(memory_space=pltpu.VMEM),  # b2   [1, 128] f32
        ],
        out_specs=pl.BlockSpec(memory_space=pltpu.VMEM),
        compiler_params=pltpu.CompilerParams(vmem_limit_bytes=vmem_limit),
        cost_estimate=pl.CostEstimate(
            flops=flops, transcendentals=n * pad,
            bytes_accessed=bytes_accessed),
    )(adj_b, idx1, idx2, x_b, w1p, b1p, w2p, b2p)

    # f32 kept for downstream log-prob precision; slice fuses into the jit.
    return out_pad[:, :nclass]


# ----------------------------------------------------------------------------
# Neighbor sampling: only the [N,k] top-k indices leave XLA (no dense adj1/2).
# TODO(synk): original `sub_graph` is not defined in the source repo; this is
# a deterministic stand-in keeping at most k neighbors per row.
# ----------------------------------------------------------------------------
def sample_neighbors(adj, k, key):
    n = adj.shape[0]
    scores = jnp.where(adj > 0.0, jax.random.uniform(key, (n, n)), -jnp.inf)
    _, idx = lax.top_k(scores, k)
    return idx.astype(jnp.int32)


# Dense f32 version of the in-kernel mask+renorm (reference only).
def _apply_sample_ref(adj, idx):
    n = adj.shape[0]
    col = jnp.arange(n)[None, :]
    keep = col == idx[:, 0:1]
    for j in range(1, idx.shape[1]):
        keep = keep | (col == idx[:, j:j + 1])
    sampled = jnp.where(keep, adj, 0.0)
    row_sum = jnp.sum(sampled, axis=1, keepdims=True)
    return sampled / jnp.maximum(row_sum, 1e-12)


# Pure-JAX f32 reference for correctness checking.
def gcn_reference(x, adj, idx1, idx2, params):
    (w1, b1), (w2, b2) = params
    adj1 = _apply_sample_ref(adj, idx1)
    adj2 = _apply_sample_ref(adj, idx2)
    h = jnp.maximum(adj1 @ (x @ w1) + b1, 0.0)
    z = adj2 @ (h @ w2) + b2
    return jax.nn.log_softmax(z, axis=1)


# ----------------------------------------------------------------------------
# Parameter init (deterministic, mirrors GraphConvolution.reset_parameters)
# ----------------------------------------------------------------------------
def init_gc_params(key, f_in, f_out):
    stdv = 1.0 / jnp.sqrt(jnp.float32(f_out))
    kw, kb = jax.random.split(key)
    w = jax.random.uniform(kw, (f_in, f_out), jnp.float32, -stdv, stdv)
    b = jax.random.uniform(kb, (1, f_out), jnp.float32, -stdv, stdv)
    return w, b


# ----------------------------------------------------------------------------
# Main
# ----------------------------------------------------------------------------
if __name__ == "__main__":
    N, NFEAT, NHID, NCLASS = 64, 32, 16, 8
    DROPOUT = 0.5          # inference mode -> dropout is identity
    SAMPLE = (4, 4)

    key = jax.random.PRNGKey(0)
    k_x, k_adj, k_p1, k_p2, k_s1, k_s2 = jax.random.split(key, 6)

    # node features
    x = jax.random.normal(k_x, (N, NFEAT), jnp.float32)

    # random sparse-ish symmetric adjacency with self loops, row-normalized
    a = (jax.random.uniform(k_adj, (N, N)) < 0.1).astype(jnp.float32)
    a = jnp.maximum(a, a.T) + jnp.eye(N, dtype=jnp.float32)
    adj = a / jnp.sum(a, axis=1, keepdims=True)

    params = (init_gc_params(k_p1, NFEAT, NHID),
              init_gc_params(k_p2, NHID, NCLASS))

    # one-time param prep (padding / bf16 casts hoisted out of the forward)
    w1p, b1p, w2p, b2p = prepare_gcn_params(params)

    # sub_graph sampling -> only [N,k] index arrays; dense adj1/adj2 are never
    # materialized in HBM (mask + renorm happen inside the kernel)
    idx1 = sample_neighbors(adj, SAMPLE[0], k_s1)
    idx2 = sample_neighbors(adj, SAMPLE[1], k_s2)

    fwd = jax.jit(functools.partial(gcn_forward_fused, nclass=NCLASS))
    out = jax.block_until_ready(fwd(x, adj, idx1, idx2, w1p, b1p, w2p, b2p))

    assert out.shape == (N, NCLASS)
    # rows of log_softmax should exp-sum to 1
    assert jnp.allclose(jnp.sum(jnp.exp(out), axis=1), 1.0, atol=1e-3)
    # compare against f32 reference (loose tolerance: bf16 MXU operands)
    ref = gcn_reference(x, adj, idx1, idx2, params)
    assert float(jnp.max(jnp.abs(out - ref))) < 0.1
    print("KERNEL_OK")
</pallas_src>

<mosaic_0001>
module attributes {stable_mosaic.version = 11 : i64} {
  func.func @_gcn_fused_kernel(%arg0: memref<64x64xbf16, #tpu.memory_space<vmem>>, %arg1: memref<64x4xi32, #tpu.memory_space<vmem>>, %arg2: memref<64x4xi32, #tpu.memory_space<vmem>>, %arg3: memref<64x32xbf16, #tpu.memory_space<vmem>>, %arg4: memref<32x128xbf16, #tpu.memory_space<vmem>>, %arg5: memref<1x128xf32, #tpu.memory_space<vmem>>, %arg6: memref<128x128xbf16, #tpu.memory_space<vmem>>, %arg7: memref<1x128xf32, #tpu.memory_space<vmem>>, %arg8: memref<64x128xf32, #tpu.memory_space<vmem>>) attributes {dimension_semantics = [], scalar_prefetch = 0 : i64, scratch_operands = 0 : i64, tpu.core_type = #tpu.core_type<tc>} {
    %c0 = arith.constant 0 : index
    %c0_0 = arith.constant 0 : index
    %0 = vector.load %arg0[%c0, %c0_0] : memref<64x64xbf16, #tpu.memory_space<vmem>>, vector<64x64xbf16>
    %1 = arith.extf %0 : vector<64x64xbf16> to vector<64x64xf32>
    %2 = tpu.iota {dimensions = array<i32: 1>} : vector<64x64xi32>
    %c0_1 = arith.constant 0 : index
    %c0_2 = arith.constant 0 : index
    %3 = vector.load %arg1[%c0_1, %c0_2] : memref<64x4xi32, #tpu.memory_space<vmem>>, vector<64x4xi32>
    %4 = vector.extract_strided_slice %3 {offsets = [0, 0], sizes = [64, 1], strides = [1, 1]} : vector<64x4xi32> to vector<64x1xi32>
    %5 = vector.broadcast %4 : vector<64x1xi32> to vector<64x64xi32>
    %6 = arith.cmpi eq, %2, %5 : vector<64x64xi32>
    %7 = vector.extract_strided_slice %3 {offsets = [0, 1], sizes = [64, 1], strides = [1, 1]} : vector<64x4xi32> to vector<64x1xi32>
    %8 = vector.broadcast %7 : vector<64x1xi32> to vector<64x64xi32>
    %9 = arith.cmpi eq, %2, %8 : vector<64x64xi32>
    %10 = arith.ori %6, %9 : vector<64x64xi1>
    %11 = vector.extract_strided_slice %3 {offsets = [0, 2], sizes = [64, 1], strides = [1, 1]} : vector<64x4xi32> to vector<64x1xi32>
    %12 = vector.broadcast %11 : vector<64x1xi32> to vector<64x64xi32>
    %13 = arith.cmpi eq, %2, %12 : vector<64x64xi32>
    %14 = arith.ori %10, %13 : vector<64x64xi1>
    %15 = vector.extract_strided_slice %3 {offsets = [0, 3], sizes = [64, 1], strides = [1, 1]} : vector<64x4xi32> to vector<64x1xi32>
    %16 = vector.broadcast %15 : vector<64x1xi32> to vector<64x64xi32>
    %17 = arith.cmpi eq, %2, %16 : vector<64x64xi32>
    %18 = arith.ori %14, %17 : vector<64x64xi1>
    %cst = arith.constant 0.000000e+00 : f32
    %19 = vector.broadcast %cst : f32 to vector<64x64xf32>
    %20 = arith.select %18, %1, %19 : vector<64x64xi1>, vector<64x64xf32>
    %cst_3 = arith.constant dense<0.000000e+00> : vector<64xf32>
    %21 = vector.multi_reduction <add>, %20, %cst_3 [1] : vector<64x64xf32> to vector<64xf32>
    %22 = vector.shape_cast %21 : vector<64xf32> to vector<64x1xf32>
    %cst_4 = arith.constant 9.99999996E-13 : f32
    %23 = vector.broadcast %cst_4 : f32 to vector<64x1xf32>
    %24 = arith.maximumf %22, %23 : vector<64x1xf32>
    %25 = tpu.reciprocal %24 : vector<64x1xf32> -> vector<64x1xf32>
    %26 = vector.broadcast %25 : vector<64x1xf32> to vector<64x64xf32>
    %27 = arith.mulf %20, %26 : vector<64x64xf32>
    %28 = arith.truncf %27 : vector<64x64xf32> to vector<64x64xbf16>
    %c0_5 = arith.constant 0 : index
    %c0_6 = arith.constant 0 : index
    %29 = vector.load %arg3[%c0_5, %c0_6] : memref<64x32xbf16, #tpu.memory_space<vmem>>, vector<64x32xbf16>
    %c0_7 = arith.constant 0 : index
    %c0_8 = arith.constant 0 : index
    %30 = vector.load %arg4[%c0_7, %c0_8] : memref<32x128xbf16, #tpu.memory_space<vmem>>, vector<32x128xbf16>
    %cst_9 = arith.constant dense<0.000000e+00> : vector<64x128xf32>
    %31 = tpu.matmul %29, %30, %cst_9 {dimension_numbers = #tpu.dot_dimension_numbers<[1], [0], [0], [1], [0, 0, 1, 1], [], []>} : vector<64x32xbf16>, vector<32x128xbf16>, vector<64x128xf32> -> vector<64x128xf32>
    %32 = arith.truncf %31 : vector<64x128xf32> to vector<64x128xbf16>
    %cst_10 = arith.constant dense<0.000000e+00> : vector<64x128xf32>
    %33 = tpu.matmul %28, %32, %cst_10 {dimension_numbers = #tpu.dot_dimension_numbers<[1], [0], [0], [1], [0, 0, 1, 1], [], []>} : vector<64x64xbf16>, vector<64x128xbf16>, vector<64x128xf32> -> vector<64x128xf32>
    %c0_11 = arith.constant 0 : index
    %c0_12 = arith.constant 0 : index
    %34 = vector.load %arg5[%c0_11, %c0_12] : memref<1x128xf32, #tpu.memory_space<vmem>>, vector<1x128xf32>
    %35 = vector.broadcast %34 : vector<1x128xf32> to vector<64x128xf32>
    %36 = arith.addf %33, %35 : vector<64x128xf32>
    %cst_13 = arith.constant 0.000000e+00 : f32
    %37 = vector.broadcast %cst_13 : f32 to vector<64x128xf32>
    %38 = arith.maximumf %36, %37 : vector<64x128xf32>
    %c0_14 = arith.constant 0 : index
    %c0_15 = arith.constant 0 : index
    %39 = vector.load %arg2[%c0_14, %c0_15] : memref<64x4xi32, #tpu.memory_space<vmem>>, vector<64x4xi32>
    %40 = vector.extract_strided_slice %39 {offsets = [0, 0], sizes = [64, 1], strides = [1, 1]} : vector<64x4xi32> to vector<64x1xi32>
    %41 = vector.broadcast %40 : vector<64x1xi32> to vector<64x64xi32>
    %42 = arith.cmpi eq, %2, %41 : vector<64x64xi32>
    %43 = vector.extract_strided_slice %39 {offsets = [0, 1], sizes = [64, 1], strides = [1, 1]} : vector<64x4xi32> to vector<64x1xi32>
    %44 = vector.broadcast %43 : vector<64x1xi32> to vector<64x64xi32>
    %45 = arith.cmpi eq, %2, %44 : vector<64x64xi32>
    %46 = arith.ori %42, %45 : vector<64x64xi1>
    %47 = vector.extract_strided_slice %39 {offsets = [0, 2], sizes = [64, 1], strides = [1, 1]} : vector<64x4xi32> to vector<64x1xi32>
    %48 = vector.broadcast %47 : vector<64x1xi32> to vector<64x64xi32>
    %49 = arith.cmpi eq, %2, %48 : vector<64x64xi32>
    %50 = arith.ori %46, %49 : vector<64x64xi1>
    %51 = vector.extract_strided_slice %39 {offsets = [0, 3], sizes = [64, 1], strides = [1, 1]} : vector<64x4xi32> to vector<64x1xi32>
    %52 = vector.broadcast %51 : vector<64x1xi32> to vector<64x64xi32>
    %53 = arith.cmpi eq, %2, %52 : vector<64x64xi32>
    %54 = arith.ori %50, %53 : vector<64x64xi1>
    %cst_16 = arith.constant 0.000000e+00 : f32
    %55 = vector.broadcast %cst_16 : f32 to vector<64x64xf32>
    %56 = arith.select %54, %1, %55 : vector<64x64xi1>, vector<64x64xf32>
    %cst_17 = arith.constant dense<0.000000e+00> : vector<64xf32>
    %57 = vector.multi_reduction <add>, %56, %cst_17 [1] : vector<64x64xf32> to vector<64xf32>
    %58 = vector.shape_cast %57 : vector<64xf32> to vector<64x1xf32>
    %cst_18 = arith.constant 9.99999996E-13 : f32
    %59 = vector.broadcast %cst_18 : f32 to vector<64x1xf32>
    %60 = arith.maximumf %58, %59 : vector<64x1xf32>
    %61 = tpu.reciprocal %60 : vector<64x1xf32> -> vector<64x1xf32>
    %62 = vector.broadcast %61 : vector<64x1xf32> to vector<64x64xf32>
    %63 = arith.mulf %56, %62 : vector<64x64xf32>
    %64 = arith.truncf %63 : vector<64x64xf32> to vector<64x64xbf16>
    %65 = arith.truncf %38 : vector<64x128xf32> to vector<64x128xbf16>
    %c0_19 = arith.constant 0 : index
    %c0_20 = arith.constant 0 : index
    %66 = vector.load %arg6[%c0_19, %c0_20] : memref<128x128xbf16, #tpu.memory_space<vmem>>, vector<128x128xbf16>
    %cst_21 = arith.constant dense<0.000000e+00> : vector<64x128xf32>
    %67 = tpu.matmul %65, %66, %cst_21 {dimension_numbers = #tpu.dot_dimension_numbers<[1], [0], [0], [1], [0, 0, 1, 1], [], []>} : vector<64x128xbf16>, vector<128x128xbf16>, vector<64x128xf32> -> vector<64x128xf32>
    %68 = arith.truncf %67 : vector<64x128xf32> to vector<64x128xbf16>
    %cst_22 = arith.constant dense<0.000000e+00> : vector<64x128xf32>
    %69 = tpu.matmul %64, %68, %cst_22 {dimension_numbers = #tpu.dot_dimension_numbers<[1], [0], [0], [1], [0, 0, 1, 1], [], []>} : vector<64x64xbf16>, vector<64x128xbf16>, vector<64x128xf32> -> vector<64x128xf32>
    %c0_23 = arith.constant 0 : index
    %c0_24 = arith.constant 0 : index
    %70 = vector.load %arg7[%c0_23, %c0_24] : memref<1x128xf32, #tpu.memory_space<vmem>>, vector<1x128xf32>
    %71 = vector.broadcast %70 : vector<1x128xf32> to vector<64x128xf32>
    %72 = arith.addf %69, %71 : vector<64x128xf32>
    %73 = tpu.iota {dimensions = array<i32: 1>} : vector<64x128xi32>
    %c8_i32 = arith.constant 8 : i32
    %74 = vector.broadcast %c8_i32 : i32 to vector<64x128xi32>
    %75 = arith.cmpi slt, %73, %74 : vector<64x128xi32>
    %cst_25 = arith.constant 0xFF800000 : f32
    %76 = vector.broadcast %cst_25 : f32 to vector<64x128xf32>
    %77 = arith.select %75, %72, %76 : vector<64x128xi1>, vector<64x128xf32>
    %cst_26 = arith.constant dense<0xFF800000> : vector<64xf32>
    %78 = vector.multi_reduction <maximumf>, %77, %cst_26 [1] : vector<64x128xf32> to vector<64xf32>
    %79 = vector.shape_cast %78 : vector<64xf32> to vector<64x1xf32>
    %80 = vector.broadcast %79 : vector<64x1xf32> to vector<64x128xf32>
    %81 = arith.subf %77, %80 : vector<64x128xf32>
    %82 = math.exp %81 : vector<64x128xf32>
    %cst_27 = arith.constant dense<0.000000e+00> : vector<64xf32>
    %83 = vector.multi_reduction <add>, %82, %cst_27 [1] : vector<64x128xf32> to vector<64xf32>
    %84 = vector.shape_cast %83 : vector<64xf32> to vector<64x1xf32>
    %85 = math.log %84 : vector<64x1xf32>
    %86 = vector.broadcast %85 : vector<64x1xf32> to vector<64x128xf32>
    %87 = arith.subf %81, %86 : vector<64x128xf32>
    %cst_28 = arith.constant 0.000000e+00 : f32
    %88 = vector.broadcast %cst_28 : f32 to vector<64x128xf32>
    %89 = arith.select %75, %87, %88 : vector<64x128xi1>, vector<64x128xf32>
    %c0_29 = arith.constant 0 : index
    %c0_30 = arith.constant 0 : index
    %90 = vector.load %arg8[%c0_29, %c0_30] : memref<64x128xf32, #tpu.memory_space<vmem>>, vector<64x128xf32>
    tpu.vector_store %arg8[%c0_29, %c0_30], %89 {strides = array<i32>} : memref<64x128xf32, #tpu.memory_space<vmem>>, vector<64x128xf32>,
    return
  }
}

</mosaic_0001>

<llo_original>
// kernel: gcn_forward_fused.1
$region0: #{gcn_forward_fused.1}
  #allocation0 [shape = 'u32[]', space=smem, size = 0x4, offset = 0x4, fixed_abs, tag = 'smem constant byte address 0x4 - core index']
  #allocation1 [shape = 'u32[144,128]{1,0:T(1,128)}', space=vmem, size = 0x12000, scoped, tag = 'internal scratch']
  %s0 = inlined_call_operand.vmem [shape: bf16[64,64], index: 0, kind: input, shape index: {}]
  %s1 = inlined_call_operand.vmem [shape: s32[64,4], index: 1, kind: input, shape index: {}]
  %s2 = inlined_call_operand.vmem [shape: s32[64,4], index: 2, kind: input, shape index: {}]
  %s3 = inlined_call_operand.vmem [shape: bf16[64,32], index: 3, kind: input, shape index: {}]
  %s4 = inlined_call_operand.vmem [shape: bf16[32,128], index: 4, kind: input, shape index: {}]
  %s5 = inlined_call_operand.vmem [shape: f32[1,128], index: 5, kind: input, shape index: {}]
  %s6 = inlined_call_operand.vmem [shape: bf16[128,128], index: 6, kind: input, shape index: {}]
  %s7 = inlined_call_operand.vmem [shape: f32[1,128], index: 7, kind: input, shape index: {}]
  %s8 = inlined_call_operand.vmem [shape: f32[64,128], index: 8, kind: output, shape index: {}]
  %s9 = sld [smem:[#allocation0]]
  $region42: #{gcn_forward_fused.1} parent=0
    _
  %s11 = ssub.s32 1, %s9
  %s12 = scalar_select 0, %s11, %s9
  // Predicated region
  $region2: #{gcn_forward_fused.1} parent=0 // pred_check
    _
  $region3: #{gcn_forward_fused.1} parent=0 // pred_check_branch
    %14 = sbr.rel (0) target = $region5
  $region4: #{gcn_forward_fused.1} parent=0 // pred_region
    _
  $region5: #{gcn_forward_fused.1} parent=0 // pred_fallthru
    _
  // Predicated region
  $region6: #{gcn_forward_fused.1} parent=0 // pred_check
    _
  $region7: #{gcn_forward_fused.1} parent=0 // pred_check_branch
    %16 = sbr.rel (0) target = $region9
  $region8: #{gcn_forward_fused.1} parent=0 // pred_region
    _
  $region9: #{gcn_forward_fused.1} parent=0 // pred_fallthru
    _
  // Predicated region
  $region10: #{gcn_forward_fused.1} parent=0 // pred_check
    _
  $region11: #{gcn_forward_fused.1} parent=0 // pred_check_branch
    %18 = sbr.rel (0) target = $region13
  $region12: #{gcn_forward_fused.1} parent=0 // pred_region
    _
  $region13: #{gcn_forward_fused.1} parent=0 // pred_fallthru
    _
  // Predicated region
  $region14: #{gcn_forward_fused.1} parent=0 // pred_check
    _
  $region15: #{gcn_forward_fused.1} parent=0 // pred_check_branch
    %20 = sbr.rel (0) target = $region17
  $region16: #{gcn_forward_fused.1} parent=0 // pred_region
    _
  $region17: #{gcn_forward_fused.1} parent=0 // pred_fallthru
    _
  // Predicated region
  $region18: #{gcn_forward_fused.1} parent=0 // pred_check
    _
  $region19: #{gcn_forward_fused.1} parent=0 // pred_check_branch
    %22 = sbr.rel (0) target = $region21
  $region20: #{gcn_forward_fused.1} parent=0 // pred_region
    _
  $region21: #{gcn_forward_fused.1} parent=0 // pred_fallthru
    _
  // Predicated region
  $region22: #{gcn_forward_fused.1} parent=0 // pred_check
    _
  $region23: #{gcn_forward_fused.1} parent=0 // pred_check_branch
    %24 = sbr.rel (0) target = $region25
  $region24: #{gcn_forward_fused.1} parent=0 // pred_region
    _
  $region25: #{gcn_forward_fused.1} parent=0 // pred_fallthru
    _
  // Predicated region
  $region26: #{gcn_forward_fused.1} parent=0 // pred_check
    _
  $region27: #{gcn_forward_fused.1} parent=0 // pred_check_branch
    %26 = sbr.rel (0) target = $region29
  $region28: #{gcn_forward_fused.1} parent=0 // pred_region
    _
  $region29: #{gcn_forward_fused.1} parent=0 // pred_fallthru
    _
  // Predicated region
  $region30: #{gcn_forward_fused.1} parent=0 // pred_check
    _
  $region31: #{gcn_forward_fused.1} parent=0 // pred_check_branch
    %28 = sbr.rel (0) target = $region33
  $region32: #{gcn_forward_fused.1} parent=0 // pred_region
    _
  $region33: #{gcn_forward_fused.1} parent=0 // pred_fallthru
    _
  %v30 = vld [vmem:[%s0] sm:$0xf]
  %v31 = vld [vmem:[%s0 + $0x4] sm:$0xf]
  %v32 = vld [vmem:[%s0 + $0x8] sm:$0xf]
  %v33 = vld [vmem:[%s0 + $0xc] sm:$0xf]
  %v34 = vld [vmem:[%s0 + $0x10] sm:$0xf]
  %v35 = vld [vmem:[%s0 + $0x14] sm:$0xf]
  %v36 = vld [vmem:[%s0 + $0x18] sm:$0xf]
  %v37 = vld [vmem:[%s0 + $0x1c] sm:$0xf]
  %v38 = vunpack.c.l.bf16 %v30
  %v39 = vunpack.c.l.bf16 %v31
  %v40 = vunpack.c.l.bf16 %v32
  %v41 = vunpack.c.l.bf16 %v33
  %v42 = vunpack.c.l.bf16 %v34
  %v43 = vunpack.c.l.bf16 %v35
  %v44 = vunpack.c.l.bf16 %v36
  %v45 = vunpack.c.l.bf16 %v37
  %v46 = vlaneseq
  %v47 = vand.u32 %v46, 127
  %v48 = vld [vmem:[%s1] sm:$0xff]
  %v49 = vld [vmem:[%s1 + $0x8] sm:$0xff]
  %v50 = vld [vmem:[%s1 + $0x10] sm:$0xff]
  %v51 = vld [vmem:[%s1 + $0x18] sm:$0xff]
  %v52 = vld [vmem:[%s1 + $0x20] sm:$0xff]
  %v53 = vld [vmem:[%s1 + $0x28] sm:$0xff]
  %v54 = vld [vmem:[%s1 + $0x30] sm:$0xff]
  %v55 = vld [vmem:[%s1 + $0x38] sm:$0xff]
  %56 = vset.pattern.permute.xlu0 0
  %57 = vperm.xlu0 %56, %v48
  %v58 = vpop.permute.xlu0 %57
  %59 = vset.pattern.permute.xlu0 0
  %60 = vperm.xlu0 %59, %v49
  %v61 = vpop.permute.xlu0 %60
  %62 = vset.pattern.permute.xlu0 0
  %63 = vperm.xlu0 %62, %v50
  %v64 = vpop.permute.xlu0 %63
  %65 = vset.pattern.permute.xlu0 0
  %66 = vperm.xlu0 %65, %v51
  %v67 = vpop.permute.xlu0 %66
  %68 = vset.pattern.permute.xlu0 0
  %69 = vperm.xlu0 %68, %v52
  %v70 = vpop.permute.xlu0 %69
  %71 = vset.pattern.permute.xlu0 0
  %72 = vperm.xlu0 %71, %v53
  %v73 = vpop.permute.xlu0 %72
  %74 = vset.pattern.permute.xlu0 0
  %75 = vperm.xlu0 %74, %v54
  %v76 = vpop.permute.xlu0 %75
  %77 = vset.pattern.permute.xlu0 0
  %78 = vperm.xlu0 %77, %v55
  %v79 = vpop.permute.xlu0 %78
  %vm80 = vcmp.eq.s32.totalorder %v47, %v58
  %vm81 = vcmp.eq.s32.totalorder %v47, %v61
  %vm82 = vcmp.eq.s32.totalorder %v47, %v64
  %vm83 = vcmp.eq.s32.totalorder %v47, %v67
  %vm84 = vcmp.eq.s32.totalorder %v47, %v70
  %vm85 = vcmp.eq.s32.totalorder %v47, %v73
  %vm86 = vcmp.eq.s32.totalorder %v47, %v76
  %vm87 = vcmp.eq.s32.totalorder %v47, %v79
  %88 = vset.pattern.permute.xlu0 1
  %89 = vperm.xlu0 %88, %v48
  %v90 = vpop.permute.xlu0 %89
  %91 = vset.pattern.permute.xlu0 1
  %92 = vperm.xlu0 %91, %v49
  %v93 = vpop.permute.xlu0 %92
  %94 = vset.pattern.permute.xlu0 1
  %95 = vperm.xlu0 %94, %v50
  %v96 = vpop.permute.xlu0 %95
  %97 = vset.pattern.permute.xlu0 1
  %98 = vperm.xlu0 %97, %v51
  %v99 = vpop.permute.xlu0 %98
  %100 = vset.pattern.permute.xlu0 1
  %101 = vperm.xlu0 %100, %v52
  %v102 = vpop.permute.xlu0 %101
  %103 = vset.pattern.permute.xlu0 1
  %104 = vperm.xlu0 %103, %v53
  %v105 = vpop.permute.xlu0 %104
  %106 = vset.pattern.permute.xlu0 1
  %107 = vperm.xlu0 %106, %v54
  %v108 = vpop.permute.xlu0 %107
  %109 = vset.pattern.permute.xlu0 1
  %110 = vperm.xlu0 %109, %v55
  %v111 = vpop.permute.xlu0 %110
  %vm112 = vcmp.eq.s32.totalorder %v47, %v90
  %vm113 = vcmp.eq.s32.totalorder %v47, %v93
  %vm114 = vcmp.eq.s32.totalorder %v47, %v96
  %vm115 = vcmp.eq.s32.totalorder %v47, %v99
  %vm116 = vcmp.eq.s32.totalorder %v47, %v102
  %vm117 = vcmp.eq.s32.totalorder %v47, %v105
  %vm118 = vcmp.eq.s32.totalorder %v47, %v108
  %vm119 = vcmp.eq.s32.totalorder %v47, %v111
  %vm120 = vmor %vm80, %vm112
  %vm121 = vmor %vm81, %vm113
  %vm122 = vmor %vm82, %vm114
  %vm123 = vmor %vm83, %vm115
  %vm124 = vmor %vm84, %vm116
  %vm125 = vmor %vm85, %vm117
  %vm126 = vmor %vm86, %vm118
  %vm127 = vmor %vm87, %vm119
  %128 = vset.pattern.permute.xlu0 2
  %129 = vperm.xlu0 %128, %v48
  %v130 = vpop.permute.xlu0 %129
  %131 = vset.pattern.permute.xlu0 2
  %132 = vperm.xlu0 %131, %v49
  %v133 = vpop.permute.xlu0 %132
  %134 = vset.pattern.permute.xlu0 2
  %135 = vperm.xlu0 %134, %v50
  %v136 = vpop.permute.xlu0 %135
  %137 = vset.pattern.permute.xlu0 2
  %138 = vperm.xlu0 %137, %v51
  %v139 = vpop.permute.xlu0 %138
  %140 = vset.pattern.permute.xlu0 2
  %141 = vperm.xlu0 %140, %v52
  %v142 = vpop.permute.xlu0 %141
  %143 = vset.pattern.permute.xlu0 2
  %144 = vperm.xlu0 %143, %v53
  %v145 = vpop.permute.xlu0 %144
  %146 = vset.pattern.permute.xlu0 2
  %147 = vperm.xlu0 %146, %v54
  %v148 = vpop.permute.xlu0 %147
  %149 = vset.pattern.permute.xlu0 2
  %150 = vperm.xlu0 %149, %v55
  %v151 = vpop.permute.xlu0 %150
  %vm152 = vcmp.eq.s32.totalorder %v47, %v130
  %vm153 = vcmp.eq.s32.totalorder %v47, %v133
  %vm154 = vcmp.eq.s32.totalorder %v47, %v136
  %vm155 = vcmp.eq.s32.totalorder %v47, %v139
  %vm156 = vcmp.eq.s32.totalorder %v47, %v142
  %vm157 = vcmp.eq.s32.totalorder %v47, %v145
  %vm158 = vcmp.eq.s32.totalorder %v47, %v148
  %vm159 = vcmp.eq.s32.totalorder %v47, %v151
  %vm160 = vmor %vm120, %vm152
  %vm161 = vmor %vm121, %vm153
  %vm162 = vmor %vm122, %vm154
  %vm163 = vmor %vm123, %vm155
  %vm164 = vmor %vm124, %vm156
  %vm165 = vmor %vm125, %vm157
  %vm166 = vmor %vm126, %vm158
  %vm167 = vmor %vm127, %vm159
  %168 = vset.pattern.permute.xlu0 3
  %169 = vperm.xlu0 %168, %v48
  %v170 = vpop.permute.xlu0 %169
  %171 = vset.pattern.permute.xlu0 3
  %172 = vperm.xlu0 %171, %v49
  %v173 = vpop.permute.xlu0 %172
  %174 = vset.pattern.permute.xlu0 3
  %175 = vperm.xlu0 %174, %v50
  %v176 = vpop.permute.xlu0 %175
  %177 = vset.pattern.permute.xlu0 3
  %178 = vperm.xlu0 %177, %v51
  %v179 = vpop.permute.xlu0 %178
  %180 = vset.pattern.permute.xlu0 3
  %181 = vperm.xlu0 %180, %v52
  %v182 = vpop.permute.xlu0 %181
  %183 = vset.pattern.permute.xlu0 3
  %184 = vperm.xlu0 %183, %v53
  %v185 = vpop.permute.xlu0 %184
  %186 = vset.pattern.permute.xlu0 3
  %187 = vperm.xlu0 %186, %v54
  %v188 = vpop.permute.xlu0 %187
  %189 = vset.pattern.permute.xlu0 3
  %190 = vperm.xlu0 %189, %v55
  %v191 = vpop.permute.xlu0 %190
  %vm192 = vcmp.eq.s32.totalorder %v47, %v170
  %vm193 = vcmp.eq.s32.totalorder %v47, %v173
  %vm194 = vcmp.eq.s32.totalorder %v47, %v176
  %vm195 = vcmp.eq.s32.totalorder %v47, %v179
  %vm196 = vcmp.eq.s32.totalorder %v47, %v182
  %vm197 = vcmp.eq.s32.totalorder %v47, %v185
  %vm198 = vcmp.eq.s32.totalorder %v47, %v188
  %vm199 = vcmp.eq.s32.totalorder %v47, %v191
  %vm200 = vmor %vm160, %vm192
  %vm201 = vmor %vm161, %vm193
  %vm202 = vmor %vm162, %vm194
  %vm203 = vmor %vm163, %vm195
  %vm204 = vmor %vm164, %vm196
  %vm205 = vmor %vm165, %vm197
  %vm206 = vmor %vm166, %vm198
  %vm207 = vmor %vm167, %vm199
  %v208 = vsel %vm200, %v38, 0.0
  %v209 = vsel %vm201, %v39, 0.0
  %v210 = vsel %vm202, %v40, 0.0
  %v211 = vsel %vm203, %v41, 0.0
  %v212 = vsel %vm204, %v42, 0.0
  %v213 = vsel %vm205, %v43, 0.0
  %v214 = vsel %vm206, %v44, 0.0
  %v215 = vsel %vm207, %v45, 0.0
  %vm216 = vcmask 523264
  %v217 = vsel %vm216, %v208, 0.0
  %218 = vadd.xlane.f32.xlu0 %v217
  %v219 = vpop.xlane.xlu0 %218
  %v220 = vsel %vm216, %v209, 0.0
  %221 = vadd.xlane.f32.xlu0 %v220
  %v222 = vpop.xlane.xlu0 %221
  %v223 = vsel %vm216, %v210, 0.0
  %224 = vadd.xlane.f32.xlu0 %v223
  %v225 = vpop.xlane.xlu0 %224
  %v226 = vsel %vm216, %v211, 0.0
  %227 = vadd.xlane.f32.xlu0 %v226
  %v228 = vpop.xlane.xlu0 %227
  %v229 = vsel %vm216, %v212, 0.0
  %230 = vadd.xlane.f32.xlu0 %v229
  %v231 = vpop.xlane.xlu0 %230
  %v232 = vsel %vm216, %v213, 0.0
  %233 = vadd.xlane.f32.xlu0 %v232
  %v234 = vpop.xlane.xlu0 %233
  %v235 = vsel %vm216, %v214, 0.0
  %236 = vadd.xlane.f32.xlu0 %v235
  %v237 = vpop.xlane.xlu0 %236
  %v238 = vsel %vm216, %v215, 0.0
  %239 = vadd.xlane.f32.xlu0 %v238
  %v240 = vpop.xlane.xlu0 %239
  %v241 = vmax.f32 %v219, 1e-12
  %v242 = vmax.f32 %v222, 1e-12
  %v243 = vmax.f32 %v225, 1e-12
  %v244 = vmax.f32 %v228, 1e-12
  %v245 = vmax.f32 %v231, 1e-12
  %v246 = vmax.f32 %v234, 1e-12
  %v247 = vmax.f32 %v237, 1e-12
  %v248 = vmax.f32 %v240, 1e-12
  %v249 = vrcp.pop %v241
  %v250 = vrcp.pop %v242
  %v251 = vrcp.pop %v243
  %v252 = vrcp.pop %v244
  %v253 = vrcp.pop %v245
  %v254 = vrcp.pop %v246
  %v255 = vrcp.pop %v247
  %v256 = vrcp.pop %v248
  %v257 = vmul.f32 %v208, %v249
  %v258 = vmul.f32 %v209, %v250
  %v259 = vmul.f32 %v210, %v251
  %v260 = vmul.f32 %v211, %v252
  %v261 = vmul.f32 %v212, %v253
  %v262 = vmul.f32 %v213, %v254
  %v263 = vmul.f32 %v214, %v255
  %v264 = vmul.f32 %v215, %v256
  %v265 = vpack.c.bf16 %v258, %v257
  %v266 = vpack.c.bf16 %v260, %v259
  %v267 = vpack.c.bf16 %v262, %v261
  %v268 = vpack.c.bf16 %v264, %v263
  %v269 = vld [vmem:[%s3] sm:$0xf]
  %v270 = vld [vmem:[%s3 + $0x4] sm:$0xf]
  %v271 = vld [vmem:[%s3 + $0x8] sm:$0xf]
  %v272 = vld [vmem:[%s3 + $0xc] sm:$0xf]
  %v273 = vld [vmem:[%s3 + $0x10] sm:$0xf]
  %v274 = vld [vmem:[%s3 + $0x14] sm:$0xf]
  %v275 = vld [vmem:[%s3 + $0x18] sm:$0xf]
  %v276 = vld [vmem:[%s3 + $0x1c] sm:$0xf]
  %v277 = vld [vmem:[%s4] sm:$0xf]
  %v278 = vld [vmem:[%s4 + $0x4] sm:$0xf]
  %v279 = vld [vmem:[%s4 + $0x8] sm:$0xf]
  %v280 = vld [vmem:[%s4 + $0xc] sm:$0xf]
  %v289 = vunpack.c.l.b16 %v269
  %v290 = vunpack.c.l.b16 %v270
  %v291 = vunpack.c.l.b16 %v271
  %v292 = vunpack.c.l.b16 %v272
  %v293 = vunpack.c.l.b16 %v273
  %v294 = vunpack.c.l.b16 %v274
  %v295 = vunpack.c.l.b16 %v275
  %v296 = vunpack.c.l.b16 %v276
  %v297 = vpack.c.b16 %v290, %v289
  %v298 = vpack.c.b16 %v292, %v291
  %v299 = vpack.c.b16 %v294, %v293
  %v300 = vpack.c.b16 %v296, %v295
  %v305 = vunpack.c.l.b16 %v277
  %v306 = vunpack.c.l.b16 %v278
  %v307 = vunpack.c.l.b16 %v279
  %v308 = vunpack.c.l.b16 %v280
  %v309 = vpack.c.b16 %v306, %v305
  %v310 = vpack.c.b16 %v308, %v307
  %vm313 = vcmask 261120
  %v315 = vsel %vm313, %v297, 0
  %v318 = vsel %vm313, %v298, 0
  %v321 = vsel %vm313, %v299, 0
  %v324 = vsel %vm313, %v300, 0
  %326 = vmatprep.subr.bf16.mxu0 0
  %327 = vmatpush1.bf16.msra.mxu0 %v309
  %328 = vmatprep.subr.bf16.mxu0 0
  %329 = vmatpush1.bf16.msra.mxu0 %v310
  %330 = vmatprep.subr.bf16.mxu0 0
  %331 = vmatpush1.bf16.msra.mxu0 0
  %332 = vmatprep.subr.bf16.mxu0 0
  %333 = vmatpush1.bf16.msra.mxu0 0
  %334 = vmatprep.subr.bf16.mxu0 0
  %335 = vmatpush1.bf16.msra.mxu0 0
  %336 = vmatprep.subr.bf16.mxu0 0
  %337 = vmatpush1.bf16.msra.mxu0 0
  %338 = vmatprep.subr.bf16.mxu0 0
  %339 = vmatpush1.bf16.msra.mxu0 0
  %340 = vmatprep.subr.bf16.mxu0 0
  %341 = vmatpush1.bf16.msra.mxu0 0
  %342 = vmatprep.subr.bf16.mxu0 0
  %343 = vmatpush1.bf16.msra.mxu0 0
  %344 = vmatprep.subr.bf16.mxu0 0
  %345 = vmatpush1.bf16.msra.mxu0 0
  %346 = vmatprep.subr.bf16.mxu0 0
  %347 = vmatpush1.bf16.msra.mxu0 0
  %348 = vmatprep.subr.bf16.mxu0 0
  %349 = vmatpush1.bf16.msra.mxu0 0
  %350 = vmatprep.subr.bf16.mxu0 0
  %351 = vmatpush1.bf16.msra.mxu0 0
  %352 = vmatprep.subr.bf16.mxu0 0
  %353 = vmatpush1.bf16.msra.mxu0 0
  %354 = vmatprep.subr.bf16.mxu0 0
  %355 = vmatpush1.bf16.msra.mxu0 0
  %356 = vmatprep.subr.bf16.mxu0 0
  %357 = vmatpush1.bf16.msra.mxu0 0
  %358 = vmatprep.mubr.bf16.mxu0 0
  %359 = vmatmul.mubr.bf16.gmra.mrb[0].mxu0 %v315
  %v360 = vpop.f32.mrb[0].mxu0
  %v361 = vadd.f32 0.0, %v360
  %v362 = vpop.f32.mrb[0].mxu0
  %v363 = vpop.f32.mrb[0].mxu0
  %v364 = vadd.f32 0.0, %v363
  %v365 = vpop.f32.mrb[0].mxu0
  %366 = vmatprep.mubr.bf16.mxu0 0
  %367 = vmatmul.mubr.bf16.gmra.mrb[0].mxu0 %v318
  %v368 = vpop.f32.mrb[0].mxu0
  %v369 = vadd.f32 0.0, %v368
  %v370 = vpop.f32.mrb[0].mxu0
  %v371 = vpop.f32.mrb[0].mxu0
  %v372 = vadd.f32 0.0, %v371
  %v373 = vpop.f32.mrb[0].mxu0
  %374 = vmatprep.mubr.bf16.mxu0 0
  %375 = vmatmul.mubr.bf16.gmra.mrb[0].mxu0 %v321
  %v376 = vpop.f32.mrb[0].mxu0
  %v377 = vadd.f32 0.0, %v376
  %v378 = vpop.f32.mrb[0].mxu0
  %v379 = vpop.f32.mrb[0].mxu0
  %v380 = vadd.f32 0.0, %v379
  %v381 = vpop.f32.mrb[0].mxu0
  %382 = vmatprep.mubr.bf16.mxu0 0
  %383 = vmatmul.mubr.bf16.gmra.mrb[0].mxu0 %v324
  %v384 = vpop.f32.mrb[0].mxu0
  %v385 = vadd.f32 0.0, %v384
  %v386 = vpop.f32.mrb[0].mxu0
  %v387 = vpop.f32.mrb[0].mxu0
  %v388 = vadd.f32 0.0, %v387
  %v389 = vpop.f32.mrb[0].mxu0
  %390 = vdwg.mxu0
  %v391 = vpack.c.bf16 %v364, %v361
  %v392 = vpack.c.bf16 %v372, %v369
  %v393 = vpack.c.bf16 %v380, %v377
  %v394 = vpack.c.bf16 %v388, %v385
  %v395 = vld [vmem:[%s5] sm:$0x1]
  %v397 = vlaneseq
  %v398 = vshrl.u32 %v397, 7
  %v399 = vsub.s32 0, %v398
  %v400 = vrot.slane %v395, %v399
  %v403 = vsel %vm216, %v265, 0
  %v406 = vsel %vm216, %v266, 0
  %v409 = vsel %vm216, %v267, 0
  %v412 = vsel %vm216, %v268, 0
  %414 = vmatprep.subr.bf16.mxu0 0
  %415 = vmatpush1.bf16.msra.mxu0 %v391
  %416 = vmatprep.subr.bf16.mxu0 0
  %417 = vmatpush1.bf16.msra.mxu0 %v392
  %418 = vmatprep.subr.bf16.mxu0 0
  %419 = vmatpush1.bf16.msra.mxu0 %v393
  %420 = vmatprep.subr.bf16.mxu0 0
  %421 = vmatpush1.bf16.msra.mxu0 %v394
  %422 = vmatprep.subr.bf16.mxu0 0
  %423 = vmatpush1.bf16.msra.mxu0 0
  %424 = vmatprep.subr.bf16.mxu0 0
  %425 = vmatpush1.bf16.msra.mxu0 0
  %426 = vmatprep.subr.bf16.mxu0 0
  %427 = vmatpush1.bf16.msra.mxu0 0
  %428 = vmatprep.subr.bf16.mxu0 0
  %429 = vmatpush1.bf16.msra.mxu0 0
  %430 = vmatprep.subr.bf16.mxu0 0
  %431 = vmatpush1.bf16.msra.mxu0 0
  %432 = vmatprep.subr.bf16.mxu0 0
  %433 = vmatpush1.bf16.msra.mxu0 0
  %434 = vmatprep.subr.bf16.mxu0 0
  %435 = vmatpush1.bf16.msra.mxu0 0
  %436 = vmatprep.subr.bf16.mxu0 0
  %437 = vmatpush1.bf16.msra.mxu0 0
  %438 = vmatprep.subr.bf16.mxu0 0
  %439 = vmatpush1.bf16.msra.mxu0 0
  %440 = vmatprep.subr.bf16.mxu0 0
  %441 = vmatpush1.bf16.msra.mxu0 0
  %442 = vmatprep.subr.bf16.mxu0 0
  %443 = vmatpush1.bf16.msra.mxu0 0
  %444 = vmatprep.subr.bf16.mxu0 0
  %445 = vmatpush1.bf16.msra.mxu0 0
  %446 = vmatprep.mubr.bf16.mxu0 0
  %447 = vmatmul.mubr.bf16.gmra.mrb[0].mxu0 %v403
  %v448 = vpop.f32.mrb[0].mxu0
  %v449 = vadd.f32 %v400, %v448
  %v450 = vpop.f32.mrb[0].mxu0
  %v451 = vpop.f32.mrb[0].mxu0
  %v452 = vadd.f32 %v400, %v451
  %v453 = vpop.f32.mrb[0].mxu0
  %454 = vmatprep.mubr.bf16.mxu0 0
  %455 = vmatmul.mubr.bf16.gmra.mrb[0].mxu0 %v406
  %v456 = vpop.f32.mrb[0].mxu0
  %v457 = vadd.f32 %v400, %v456
  %v458 = vpop.f32.mrb[0].mxu0
  %v459 = vpop.f32.mrb[0].mxu0
  %v460 = vadd.f32 %v400, %v459
  %v461 = vpop.f32.mrb[0].mxu0
  %462 = vmatprep.mubr.bf16.mxu0 0
  %463 = vmatmul.mubr.bf16.gmra.mrb[0].mxu0 %v409
  %v464 = vpop.f32.mrb[0].mxu0
  %v465 = vadd.f32 %v400, %v464
  %v466 = vpop.f32.mrb[0].mxu0
  %v467 = vpop.f32.mrb[0].mxu0
  %v468 = vadd.f32 %v400, %v467
  %v469 = vpop.f32.mrb[0].mxu0
  %470 = vmatprep.mubr.bf16.mxu0 0
  %471 = vmatmul.mubr.bf16.gmra.mrb[0].mxu0 %v412
  %v472 = vpop.f32.mrb[0].mxu0
  %v473 = vadd.f32 %v400, %v472
  %v474 = vpop.f32.mrb[0].mxu0
  %v475 = vpop.f32.mrb[0].mxu0
  %v476 = vadd.f32 %v400, %v475
  %v477 = vpop.f32.mrb[0].mxu0
  %478 = vdwg.mxu0
  %v479 = vmax.f32 %v449, 0.0
  %v480 = vmax.f32 %v452, 0.0
  %v481 = vmax.f32 %v457, 0.0
  %v482 = vmax.f32 %v460, 0.0
  %v483 = vmax.f32 %v465, 0.0
  %v484 = vmax.f32 %v468, 0.0
  %v485 = vmax.f32 %v473, 0.0
  %v486 = vmax.f32 %v476, 0.0
  %v487 = vld [vmem:[%s2] sm:$0xff]
  %v488 = vld [vmem:[%s2 + $0x8] sm:$0xff]
  %v489 = vld [vmem:[%s2 + $0x10] sm:$0xff]
  %v490 = vld [vmem:[%s2 + $0x18] sm:$0xff]
  %v491 = vld [vmem:[%s2 + $0x20] sm:$0xff]
  %v492 = vld [vmem:[%s2 + $0x28] sm:$0xff]
  %v493 = vld [vmem:[%s2 + $0x30] sm:$0xff]
  %v494 = vld [vmem:[%s2 + $0x38] sm:$0xff]
  %495 = vset.pattern.permute.xlu0 0
  %496 = vperm.xlu0 %495, %v487
  %v497 = vpop.permute.xlu0 %496
  %498 = vset.pattern.permute.xlu0 0
  %499 = vperm.xlu0 %498, %v488
  %v500 = vpop.permute.xlu0 %499
  %501 = vset.pattern.permute.xlu0 0
  %502 = vperm.xlu0 %501, %v489
  %v503 = vpop.permute.xlu0 %502
  %504 = vset.pattern.permute.xlu0 0
  %505 = vperm.xlu0 %504, %v490
  %v506 = vpop.permute.xlu0 %505
  %507 = vset.pattern.permute.xlu0 0
  %508 = vperm.xlu0 %507, %v491
  %v509 = vpop.permute.xlu0 %508
  %510 = vset.pattern.permute.xlu0 0
  %511 = vperm.xlu0 %510, %v492
  %v512 = vpop.permute.xlu0 %511
  %513 = vset.pattern.permute.xlu0 0
  %514 = vperm.xlu0 %513, %v493
  %v515 = vpop.permute.xlu0 %514
  %516 = vset.pattern.permute.xlu0 0
  %517 = vperm.xlu0 %516, %v494
  %v518 = vpop.permute.xlu0 %517
  %vm519 = vcmp.eq.s32.totalorder %v47, %v497
  %vm520 = vcmp.eq.s32.totalorder %v47, %v500
  %vm521 = vcmp.eq.s32.totalorder %v47, %v503
  %vm522 = vcmp.eq.s32.totalorder %v47, %v506
  %vm523 = vcmp.eq.s32.totalorder %v47, %v509
  %vm524 = vcmp.eq.s32.totalorder %v47, %v512
  %vm525 = vcmp.eq.s32.totalorder %v47, %v515
  %vm526 = vcmp.eq.s32.totalorder %v47, %v518
  %527 = vset.pattern.permute.xlu0 1
  %528 = vperm.xlu0 %527, %v487
  %v529 = vpop.permute.xlu0 %528
  %530 = vset.pattern.permute.xlu0 1
  %531 = vperm.xlu0 %530, %v488
  %v532 = vpop.permute.xlu0 %531
  %533 = vset.pattern.permute.xlu0 1
  %534 = vperm.xlu0 %533, %v489
  %v535 = vpop.permute.xlu0 %534
  %536 = vset.pattern.permute.xlu0 1
  %537 = vperm.xlu0 %536, %v490
  %v538 = vpop.permute.xlu0 %537
  %539 = vset.pattern.permute.xlu0 1
  %540 = vperm.xlu0 %539, %v491
  %v541 = vpop.permute.xlu0 %540
  %542 = vset.pattern.permute.xlu0 1
  %543 = vperm.xlu0 %542, %v492
  %v544 = vpop.permute.xlu0 %543
  %545 = vset.pattern.permute.xlu0 1
  %546 = vperm.xlu0 %545, %v493
  %v547 = vpop.permute.xlu0 %546
  %548 = vset.pattern.permute.xlu0 1
  %549 = vperm.xlu0 %548, %v494
  %v550 = vpop.permute.xlu0 %549
  %vm551 = vcmp.eq.s32.totalorder %v47, %v529
  %vm552 = vcmp.eq.s32.totalorder %v47, %v532
  %vm553 = vcmp.eq.s32.totalorder %v47, %v535
  %vm554 = vcmp.eq.s32.totalorder %v47, %v538
  %vm555 = vcmp.eq.s32.totalorder %v47, %v541
  %vm556 = vcmp.eq.s32.totalorder %v47, %v544
  %vm557 = vcmp.eq.s32.totalorder %v47, %v547
  %vm558 = vcmp.eq.s32.totalorder %v47, %v550
  %vm559 = vmor %vm519, %vm551
  %vm560 = vmor %vm520, %vm552
  %vm561 = vmor %vm521, %vm553
  %vm562 = vmor %vm522, %vm554
  %vm563 = vmor %vm523, %vm555
  %vm564 = vmor %vm524, %vm556
  %vm565 = vmor %vm525, %vm557
  %vm566 = vmor %vm526, %vm558
  %567 = vset.pattern.permute.xlu0 2
  %568 = vperm.xlu0 %567, %v487
  %v569 = vpop.permute.xlu0 %568
  %570 = vset.pattern.permute.xlu0 2
  %571 = vperm.xlu0 %570, %v488
  %v572 = vpop.permute.xlu0 %571
  %573 = vset.pattern.permute.xlu0 2
  %574 = vperm.xlu0 %573, %v489
  %v575 = vpop.permute.xlu0 %574
  %576 = vset.pattern.permute.xlu0 2
  %577 = vperm.xlu0 %576, %v490
  %v578 = vpop.permute.xlu0 %577
  %579 = vset.pattern.permute.xlu0 2
  %580 = vperm.xlu0 %579, %v491
  %v581 = vpop.permute.xlu0 %580
  %582 = vset.pattern.permute.xlu0 2
  %583 = vperm.xlu0 %582, %v492
  %v584 = vpop.permute.xlu0 %583
  %585 = vset.pattern.permute.xlu0 2
  %586 = vperm.xlu0 %585, %v493
  %v587 = vpop.permute.xlu0 %586
  %588 = vset.pattern.permute.xlu0 2
  %589 = vperm.xlu0 %588, %v494
  %v590 = vpop.permute.xlu0 %589
  %vm591 = vcmp.eq.s32.totalorder %v47, %v569
  %vm592 = vcmp.eq.s32.totalorder %v47, %v572
  %vm593 = vcmp.eq.s32.totalorder %v47, %v575
  %vm594 = vcmp.eq.s32.totalorder %v47, %v578
  %vm595 = vcmp.eq.s32.totalorder %v47, %v581
  %vm596 = vcmp.eq.s32.totalorder %v47, %v584
  %vm597 = vcmp.eq.s32.totalorder %v47, %v587
  %vm598 = vcmp.eq.s32.totalorder %v47, %v590
  %vm599 = vmor %vm559, %vm591
  %vm600 = vmor %vm560, %vm592
  %vm601 = vmor %vm561, %vm593
  %vm602 = vmor %vm562, %vm594
  %vm603 = vmor %vm563, %vm595
  %vm604 = vmor %vm564, %vm596
  %vm605 = vmor %vm565, %vm597
  %vm606 = vmor %vm566, %vm598
  %607 = vset.pattern.permute.xlu0 3
  %608 = vperm.xlu0 %607, %v487
  %v609 = vpop.permute.xlu0 %608
  %610 = vset.pattern.permute.xlu0 3
  %611 = vperm.xlu0 %610, %v488
  %v612 = vpop.permute.xlu0 %611
  %613 = vset.pattern.permute.xlu0 3
  %614 = vperm.xlu0 %613, %v489
  %v615 = vpop.permute.xlu0 %614
  %616 = vset.pattern.permute.xlu0 3
  %617 = vperm.xlu0 %616, %v490
  %v618 = vpop.permute.xlu0 %617
  %619 = vset.pattern.permute.xlu0 3
  %620 = vperm.xlu0 %619, %v491
  %v621 = vpop.permute.xlu0 %620
  %622 = vset.pattern.permute.xlu0 3
  %623 = vperm.xlu0 %622, %v492
  %v624 = vpop.permute.xlu0 %623
  %625 = vset.pattern.permute.xlu0 3
  %626 = vperm.xlu0 %625, %v493
  %v627 = vpop.permute.xlu0 %626
  %628 = vset.pattern.permute.xlu0 3
  %629 = vperm.xlu0 %628, %v494
  %v630 = vpop.permute.xlu0 %629
  %vm631 = vcmp.eq.s32.totalorder %v47, %v609
  %vm632 = vcmp.eq.s32.totalorder %v47, %v612
  %vm633 = vcmp.eq.s32.totalorder %v47, %v615
  %vm634 = vcmp.eq.s32.totalorder %v47, %v618
  %vm635 = vcmp.eq.s32.totalorder %v47, %v621
  %vm636 = vcmp.eq.s32.totalorder %v47, %v624
  %vm637 = vcmp.eq.s32.totalorder %v47, %v627
  %vm638 = vcmp.eq.s32.totalorder %v47, %v630
  %vm639 = vmor %vm599, %vm631
  %vm640 = vmor %vm600, %vm632
  %vm641 = vmor %vm601, %vm633
  %vm642 = vmor %vm602, %vm634
  %vm643 = vmor %vm603, %vm635
  %vm644 = vmor %vm604, %vm636
  %vm645 = vmor %vm605, %vm637
  %vm646 = vmor %vm606, %vm638
  %v647 = vsel %vm639, %v38, 0.0
  %v648 = vsel %vm640, %v39, 0.0
  %v649 = vsel %vm641, %v40, 0.0
  %v650 = vsel %vm642, %v41, 0.0
  %v651 = vsel %vm643, %v42, 0.0
  %v652 = vsel %vm644, %v43, 0.0
  %v653 = vsel %vm645, %v44, 0.0
  %v654 = vsel %vm646, %v45, 0.0
  %v655 = vsel %vm216, %v647, 0.0
  %656 = vadd.xlane.f32.xlu0 %v655
  %v657 = vpop.xlane.xlu0 %656
  %v658 = vsel %vm216, %v648, 0.0
  %659 = vadd.xlane.f32.xlu0 %v658
  %v660 = vpop.xlane.xlu0 %659
  %v661 = vsel %vm216, %v649, 0.0
  %662 = vadd.xlane.f32.xlu0 %v661
  %v663 = vpop.xlane.xlu0 %662
  %v664 = vsel %vm216, %v650, 0.0
  %665 = vadd.xlane.f32.xlu0 %v664
  %v666 = vpop.xlane.xlu0 %665
  %v667 = vsel %vm216, %v651, 0.0
  %668 = vadd.xlane.f32.xlu0 %v667
  %v669 = vpop.xlane.xlu0 %668
  %v670 = vsel %vm216, %v652, 0.0
  %671 = vadd.xlane.f32.xlu0 %v670
  %v672 = vpop.xlane.xlu0 %671
  %v673 = vsel %vm216, %v653, 0.0
  %674 = vadd.xlane.f32.xlu0 %v673
  %v675 = vpop.xlane.xlu0 %674
  %v676 = vsel %vm216, %v654, 0.0
  %677 = vadd.xlane.f32.xlu0 %v676
  %v678 = vpop.xlane.xlu0 %677
  %v679 = vmax.f32 %v657, 1e-12
  %v680 = vmax.f32 %v660, 1e-12
  %v681 = vmax.f32 %v663, 1e-12
  %v682 = vmax.f32 %v666, 1e-12
  %v683 = vmax.f32 %v669, 1e-12
  %v684 = vmax.f32 %v672, 1e-12
  %v685 = vmax.f32 %v675, 1e-12
  %v686 = vmax.f32 %v678, 1e-12
  %v687 = vrcp.pop %v679
  %v688 = vrcp.pop %v680
  %v689 = vrcp.pop %v681
  %v690 = vrcp.pop %v682
  %v691 = vrcp.pop %v683
  %v692 = vrcp.pop %v684
  %v693 = vrcp.pop %v685
  %v694 = vrcp.pop %v686
  %v695 = vmul.f32 %v647, %v687
  %v696 = vmul.f32 %v648, %v688
  %v697 = vmul.f32 %v649, %v689
  %v698 = vmul.f32 %v650, %v690
  %v699 = vmul.f32 %v651, %v691
  %v700 = vmul.f32 %v652, %v692
  %v701 = vmul.f32 %v653, %v693
  %v702 = vmul.f32 %v654, %v694
  %v703 = vpack.c.bf16 %v696, %v695
  %v704 = vpack.c.bf16 %v698, %v697
  %v705 = vpack.c.bf16 %v700, %v699
  %v706 = vpack.c.bf16 %v702, %v701
  %v707 = vpack.c.bf16 %v480, %v479
  %v708 = vpack.c.bf16 %v482, %v481
  %v709 = vpack.c.bf16 %v484, %v483
  %v710 = vpack.c.bf16 %v486, %v485
  %v711 = vld [vmem:[%s6] sm:$0xf]
  %v712 = vld [vmem:[%s6 + $0x4] sm:$0xf]
  %v713 = vld [vmem:[%s6 + $0x8] sm:$0xf]
  %v714 = vld [vmem:[%s6 + $0xc] sm:$0xf]
  %v715 = vld [vmem:[%s6 + $0x10] sm:$0xf]
  %v716 = vld [vmem:[%s6 + $0x14] sm:$0xf]
  %v717 = vld [vmem:[%s6 + $0x18] sm:$0xf]
  %v718 = vld [vmem:[%s6 + $0x1c] sm:$0xf]
  %v719 = vld [vmem:[%s6 + $0x20] sm:$0xf]
  %v720 = vld [vmem:[%s6 + $0x24] sm:$0xf]
  %v721 = vld [vmem:[%s6 + $0x28] sm:$0xf]
  %v722 = vld [vmem:[%s6 + $0x2c] sm:$0xf]
  %v723 = vld [vmem:[%s6 + $0x30] sm:$0xf]
  %v724 = vld [vmem:[%s6 + $0x34] sm:$0xf]
  %v725 = vld [vmem:[%s6 + $0x38] sm:$0xf]
  %v726 = vld [vmem:[%s6 + $0x3c] sm:$0xf]
  %v743 = vunpack.c.l.b16 %v711
  %v744 = vunpack.c.l.b16 %v712
  %v745 = vunpack.c.l.b16 %v713
  %v746 = vunpack.c.l.b16 %v714
  %v747 = vunpack.c.l.b16 %v715
  %v748 = vunpack.c.l.b16 %v716
  %v749 = vunpack.c.l.b16 %v717
  %v750 = vunpack.c.l.b16 %v718
  %v751 = vunpack.c.l.b16 %v719
  %v752 = vunpack.c.l.b16 %v720
  %v753 = vunpack.c.l.b16 %v721
  %v754 = vunpack.c.l.b16 %v722
  %v755 = vunpack.c.l.b16 %v723
  %v756 = vunpack.c.l.b16 %v724
  %v757 = vunpack.c.l.b16 %v725
  %v758 = vunpack.c.l.b16 %v726
  %v759 = vpack.c.b16 %v744, %v743
  %v760 = vpack.c.b16 %v746, %v745
  %v761 = vpack.c.b16 %v748, %v747
  %v762 = vpack.c.b16 %v750, %v749
  %v763 = vpack.c.b16 %v752, %v751
  %v764 = vpack.c.b16 %v754, %v753
  %v765 = vpack.c.b16 %v756, %v755
  %v766 = vpack.c.b16 %v758, %v757
  %775 = vmatprep.subr.bf16.mxu0 0
  %776 = vmatpush1.bf16.msra.mxu0 %v759
  %777 = vmatprep.subr.bf16.mxu0 0
  %778 = vmatpush1.bf16.msra.mxu0 %v760
  %779 = vmatprep.subr.bf16.mxu0 0
  %780 = vmatpush1.bf16.msra.mxu0 %v761
  %781 = vmatprep.subr.bf16.mxu0 0
  %782 = vmatpush1.bf16.msra.mxu0 %v762
  %783 = vmatprep.subr.bf16.mxu0 0
  %784 = vmatpush1.bf16.msra.mxu0 %v763
  %785 = vmatprep.subr.bf16.mxu0 0
  %786 = vmatpush1.bf16.msra.mxu0 %v764
  %787 = vmatprep.subr.bf16.mxu0 0
  %788 = vmatpush1.bf16.msra.mxu0 %v765
  %789 = vmatprep.subr.bf16.mxu0 0
  %790 = vmatpush1.bf16.msra.mxu0 %v766
  %791 = vmatprep.subr.bf16.mxu0 0
  %792 = vmatpush1.bf16.msra.mxu0 0
  %793 = vmatprep.subr.bf16.mxu0 0
  %794 = vmatpush1.bf16.msra.mxu0 0
  %795 = vmatprep.subr.bf16.mxu0 0
  %796 = vmatpush1.bf16.msra.mxu0 0
  %797 = vmatprep.subr.bf16.mxu0 0
  %798 = vmatpush1.bf16.msra.mxu0 0
  %799 = vmatprep.subr.bf16.mxu0 0
  %800 = vmatpush1.bf16.msra.mxu0 0
  %801 = vmatprep.subr.bf16.mxu0 0
  %802 = vmatpush1.bf16.msra.mxu0 0
  %803 = vmatprep.subr.bf16.mxu0 0
  %804 = vmatpush1.bf16.msra.mxu0 0
  %805 = vmatprep.subr.bf16.mxu0 0
  %806 = vmatpush1.bf16.msra.mxu0 0
  %807 = vmatprep.mubr.bf16.mxu0 0
  %808 = vmatmul.mubr.bf16.gmra.mrb[0].mxu0 %v707
  %v809 = vpop.f32.mrb[0].mxu0
  %v810 = vadd.f32 0.0, %v809
  %v811 = vpop.f32.mrb[0].mxu0
  %v812 = vpop.f32.mrb[0].mxu0
  %v813 = vadd.f32 0.0, %v812
  %v814 = vpop.f32.mrb[0].mxu0
  %815 = vmatprep.mubr.bf16.mxu0 0
  %816 = vmatmul.mubr.bf16.gmra.mrb[0].mxu0 %v708
  %v817 = vpop.f32.mrb[0].mxu0
  %v818 = vadd.f32 0.0, %v817
  %v819 = vpop.f32.mrb[0].mxu0
  %v820 = vpop.f32.mrb[0].mxu0
  %v821 = vadd.f32 0.0, %v820
  %v822 = vpop.f32.mrb[0].mxu0
  %823 = vmatprep.mubr.bf16.mxu0 0
  %824 = vmatmul.mubr.bf16.gmra.mrb[0].mxu0 %v709
  %v825 = vpop.f32.mrb[0].mxu0
  %v826 = vadd.f32 0.0, %v825
  %v827 = vpop.f32.mrb[0].mxu0
  %v828 = vpop.f32.mrb[0].mxu0
  %v829 = vadd.f32 0.0, %v828
  %v830 = vpop.f32.mrb[0].mxu0
  %831 = vmatprep.mubr.bf16.mxu0 0
  %832 = vmatmul.mubr.bf16.gmra.mrb[0].mxu0 %v710
  %v833 = vpop.f32.mrb[0].mxu0
  %v834 = vadd.f32 0.0, %v833
  %v835 = vpop.f32.mrb[0].mxu0
  %v836 = vpop.f32.mrb[0].mxu0
  %v837 = vadd.f32 0.0, %v836
  %v838 = vpop.f32.mrb[0].mxu0
  %839 = vdwg.mxu0
  %v840 = vpack.c.bf16 %v813, %v810
  %v841 = vpack.c.bf16 %v821, %v818
  %v842 = vpack.c.bf16 %v829, %v826
  %v843 = vpack.c.bf16 %v837, %v834
  %v844 = vld [vmem:[%s7] sm:$0x1]
  %v846 = vlaneseq
  %v847 = vshrl.u32 %v846, 7
  %v848 = vsub.s32 0, %v847
  %v849 = vrot.slane %v844, %v848
  %v852 = vsel %vm216, %v703, 0
  %v855 = vsel %vm216, %v704, 0
  %v858 = vsel %vm216, %v705, 0
  %v861 = vsel %vm216, %v706, 0
  %863 = vmatprep.subr.bf16.mxu0 0
  %864 = vmatpush1.bf16.msra.mxu0 %v840
  %865 = vmatprep.subr.bf16.mxu0 0
  %866 = vmatpush1.bf16.msra.mxu0 %v841
  %867 = vmatprep.subr.bf16.mxu0 0
  %868 = vmatpush1.bf16.msra.mxu0 %v842
  %869 = vmatprep.subr.bf16.mxu0 0
  %870 = vmatpush1.bf16.msra.mxu0 %v843
  %871 = vmatprep.subr.bf16.mxu0 0
  %872 = vmatpush1.bf16.msra.mxu0 0
  %873 = vmatprep.subr.bf16.mxu0 0
  %874 = vmatpush1.bf16.msra.mxu0 0
  %875 = vmatprep.subr.bf16.mxu0 0
  %876 = vmatpush1.bf16.msra.mxu0 0
  %877 = vmatprep.subr.bf16.mxu0 0
  %878 = vmatpush1.bf16.msra.mxu0 0
  %879 = vmatprep.subr.bf16.mxu0 0
  %880 = vmatpush1.bf16.msra.mxu0 0
  %881 = vmatprep.subr.bf16.mxu0 0
  %882 = vmatpush1.bf16.msra.mxu0 0
  %883 = vmatprep.subr.bf16.mxu0 0
  %884 = vmatpush1.bf16.msra.mxu0 0
  %885 = vmatprep.subr.bf16.mxu0 0
  %886 = vmatpush1.bf16.msra.mxu0 0
  %887 = vmatprep.subr.bf16.mxu0 0
  %888 = vmatpush1.bf16.msra.mxu0 0
  %889 = vmatprep.subr.bf16.mxu0 0
  %890 = vmatpush1.bf16.msra.mxu0 0
  %891 = vmatprep.subr.bf16.mxu0 0
  %892 = vmatpush1.bf16.msra.mxu0 0
  %893 = vmatprep.subr.bf16.mxu0 0
  %894 = vmatpush1.bf16.msra.mxu0 0
  %895 = vmatprep.mubr.bf16.mxu0 0
  %896 = vmatmul.mubr.bf16.gmra.mrb[0].mxu0 %v852
  %v897 = vpop.f32.mrb[0].mxu0
  %v898 = vadd.f32 %v849, %v897
  %v899 = vpop.f32.mrb[0].mxu0
  %v900 = vpop.f32.mrb[0].mxu0
  %v901 = vadd.f32 %v849, %v900
  %v902 = vpop.f32.mrb[0].mxu0
  %903 = vmatprep.mubr.bf16.mxu0 0
  %904 = vmatmul.mubr.bf16.gmra.mrb[0].mxu0 %v855
  %v905 = vpop.f32.mrb[0].mxu0
  %v906 = vadd.f32 %v849, %v905
  %v907 = vpop.f32.mrb[0].mxu0
  %v908 = vpop.f32.mrb[0].mxu0
  %v909 = vadd.f32 %v849, %v908
  %v910 = vpop.f32.mrb[0].mxu0
  %911 = vmatprep.mubr.bf16.mxu0 0
  %912 = vmatmul.mubr.bf16.gmra.mrb[0].mxu0 %v858
  %v913 = vpop.f32.mrb[0].mxu0
  %v914 = vadd.f32 %v849, %v913
  %v915 = vpop.f32.mrb[0].mxu0
  %v916 = vpop.f32.mrb[0].mxu0
  %v917 = vadd.f32 %v849, %v916
  %v918 = vpop.f32.mrb[0].mxu0
  %919 = vmatprep.mubr.bf16.mxu0 0
  %920 = vmatmul.mubr.bf16.gmra.mrb[0].mxu0 %v861
  %v921 = vpop.f32.mrb[0].mxu0
  %v922 = vadd.f32 %v849, %v921
  %v923 = vpop.f32.mrb[0].mxu0
  %v924 = vpop.f32.mrb[0].mxu0
  %v925 = vadd.f32 %v849, %v924
  %v926 = vpop.f32.mrb[0].mxu0
  %927 = vdwg.mxu0
  %vm928 = vcmp.lt.s32.totalorder %v47, 8
  %v929 = vsel %vm928, %v898, -inf
  %v930 = vsel %vm928, %v901, -inf
  %v931 = vsel %vm928, %v906, -inf
  %v932 = vsel %vm928, %v909, -inf
  %v933 = vsel %vm928, %v914, -inf
  %v934 = vsel %vm928, %v917, -inf
  %v935 = vsel %vm928, %v922, -inf
  %v936 = vsel %vm928, %v925, -inf
  %937 = vmax.xlane.f32.xlu0 %v929
  %v938 = vpop.xlane.xlu0 %937
  %939 = vmax.xlane.f32.xlu0 %v930
  %v940 = vpop.xlane.xlu0 %939
  %941 = vmax.xlane.f32.xlu0 %v931
  %v942 = vpop.xlane.xlu0 %941
  %943 = vmax.xlane.f32.xlu0 %v932
  %v944 = vpop.xlane.xlu0 %943
  %945 = vmax.xlane.f32.xlu0 %v933
  %v946 = vpop.xlane.xlu0 %945
  %947 = vmax.xlane.f32.xlu0 %v934
  %v948 = vpop.xlane.xlu0 %947
  %949 = vmax.xlane.f32.xlu0 %v935
  %v950 = vpop.xlane.xlu0 %949
  %951 = vmax.xlane.f32.xlu0 %v936
  %v952 = vpop.xlane.xlu0 %951
  %v953 = vsub.f32 %v929, %v938
  %v954 = vsub.f32 %v930, %v940
  %v955 = vsub.f32 %v931, %v942
  %v956 = vsub.f32 %v932, %v944
  %v957 = vsub.f32 %v933, %v946
  %v958 = vsub.f32 %v934, %v948
  %v959 = vsub.f32 %v935, %v950
  %v960 = vsub.f32 %v936, %v952
  %v961 = vmul.f32 %v953, 1.442695
  %v962 = vpow.pop %v961
  %v963 = vmul.f32 %v954, 1.442695
  %v964 = vpow.pop %v963
  %v965 = vmul.f32 %v955, 1.442695
  %v966 = vpow.pop %v965
  %v967 = vmul.f32 %v956, 1.442695
  %v968 = vpow.pop %v967
  %v969 = vmul.f32 %v957, 1.442695
  %v970 = vpow.pop %v969
  %v971 = vmul.f32 %v958, 1.442695
  %v972 = vpow.pop %v971
  %v973 = vmul.f32 %v959, 1.442695
  %v974 = vpow.pop %v973
  %v975 = vmul.f32 %v960, 1.442695
  %v976 = vpow.pop %v975
  %977 = vadd.xlane.f32.xlu0 %v962
  %v978 = vpop.xlane.xlu0 %977
  %979 = vadd.xlane.f32.xlu0 %v964
  %v980 = vpop.xlane.xlu0 %979
  %981 = vadd.xlane.f32.xlu0 %v966
  %v982 = vpop.xlane.xlu0 %981
  %983 = vadd.xlane.f32.xlu0 %v968
  %v984 = vpop.xlane.xlu0 %983
  %985 = vadd.xlane.f32.xlu0 %v970
  %v986 = vpop.xlane.xlu0 %985
  %987 = vadd.xlane.f32.xlu0 %v972
  %v988 = vpop.xlane.xlu0 %987
  %989 = vadd.xlane.f32.xlu0 %v974
  %v990 = vpop.xlane.xlu0 %989
  %991 = vadd.xlane.f32.xlu0 %v976
  %v992 = vpop.xlane.xlu0 %991
  %v993 = vlog2.pop %v978
  %v994 = vmul.f32 %v993, 0.6931472
  %v995 = vlog2.pop %v980
  %v996 = vmul.f32 %v995, 0.6931472
  %v997 = vlog2.pop %v982
  %v998 = vmul.f32 %v997, 0.6931472
  %v999 = vlog2.pop %v984
  %v1000 = vmul.f32 %v999, 0.6931472
  %v1001 = vlog2.pop %v986
  %v1002 = vmul.f32 %v1001, 0.6931472
  %v1003 = vlog2.pop %v988
  %v1004 = vmul.f32 %v1003, 0.6931472
  %v1005 = vlog2.pop %v990
  %v1006 = vmul.f32 %v1005, 0.6931472
  %v1007 = vlog2.pop %v992
  %v1008 = vmul.f32 %v1007, 0.6931472
  %v1009 = vsub.f32 %v953, %v994
  %v1010 = vsub.f32 %v954, %v996
  %v1011 = vsub.f32 %v955, %v998
  %v1012 = vsub.f32 %v956, %v1000
  %v1013 = vsub.f32 %v957, %v1002
  %v1014 = vsub.f32 %v958, %v1004
  %v1015 = vsub.f32 %v959, %v1006
  %v1016 = vsub.f32 %v960, %v1008
  %v1017 = vsel %vm928, %v1009, 0.0
  %v1018 = vsel %vm928, %v1010, 0.0
  %v1019 = vsel %vm928, %v1011, 0.0
  %v1020 = vsel %vm928, %v1012, 0.0
  %v1021 = vsel %vm928, %v1013, 0.0
  %v1022 = vsel %vm928, %v1014, 0.0
  %v1023 = vsel %vm928, %v1015, 0.0
  %v1024 = vsel %vm928, %v1016, 0.0
  %1025 = vst [vmem:[%s8] sm:$0xff] %v1017
  %1026 = vst [vmem:[%s8 + $0x8] sm:$0xff] %v1018
  %1027 = vst [vmem:[%s8 + $0x10] sm:$0xff] %v1019
  %1028 = vst [vmem:[%s8 + $0x18] sm:$0xff] %v1020
  %1029 = vst [vmem:[%s8 + $0x20] sm:$0xff] %v1021
  %1030 = vst [vmem:[%s8 + $0x28] sm:$0xff] %v1022
  %1031 = vst [vmem:[%s8 + $0x30] sm:$0xff] %v1023
  %1032 = vst [vmem:[%s8 + $0x38] sm:$0xff] %v1024
  // Predicated region
  $region34: #{gcn_forward_fused.1} parent=0 // pred_check
    _
  $region35: #{gcn_forward_fused.1} parent=0 // pred_check_branch
    %1034 = sbr.rel (0) target = $region37
  $region36: #{gcn_forward_fused.1} parent=0 // pred_region
    _
  $region37: #{gcn_forward_fused.1} parent=0 // pred_fallthru
    _
  // Predicated region
  $region38: #{gcn_forward_fused.1} parent=0 // pred_check
    _
  $region39: #{gcn_forward_fused.1} parent=0 // pred_check_branch
    %1036 = sbr.rel (0) target = $region41
  $region40: #{gcn_forward_fused.1} parent=0 // pred_region
    _
  $region41: #{gcn_forward_fused.1} parent=0 // pred_fallthru
    _

</llo_original>
